<compile_context>
chip_gen: v7x
topology: tpu7x:2x2x1
jax: 0.10.0
libtpu: 0.0.40
codegen_flags: <defaults>
</compile_context>

<pallas_src>
import numpy as np
import jax
import jax.numpy as jnp
from jax.experimental import pallas as pl
from jax.experimental.pallas import tpu as pltpu


def _round_up(a, b):
    return ((a + b - 1) // b) * b


def phabs_kernel(p_ref, x_ref, o_ref):
    # p_ref: SMEM (3,) float32 -> [half_amax, bias(=pKa*half_inv_phi), half_inv_phi]
    half_amax = p_ref[0]
    bias = p_ref[1]
    half_inv_phi = p_ref[2]
    xv = x_ref[...].astype(jnp.float32)
    t = jnp.tanh(xv * half_inv_phi - bias)          # EUP tanh; no per-elem divide
    o_ref[...] = (half_amax + half_amax * t).astype(o_ref.dtype)


def phabs_forward(x, weights, *, max_rows_per_block=2048):
    """Apply the pHAbs elementwise op via Pallas. Works for any input shape."""
    orig_shape = x.shape
    dtype = x.dtype
    total = x.size

    # Derived scalars, computed once (outside the kernel) in f32.
    w = weights.astype(jnp.float32)
    half_amax = 0.5 * w[0]
    half_inv_phi = 0.5 / w[2]
    bias = w[1] * half_inv_phi
    params = jnp.stack([half_amax, bias, half_inv_phi])

    # Pick the widest lane count (>=128) that divides the element count so the
    # hot path needs no pad / slice-back copies; fall back to a tiny (<lanes)
    # pad only when unavoidable.
    lanes = None
    for cand in (512, 256, 128):
        if total % cand == 0:
            lanes = cand
            break
    flat = x.reshape(-1)
    pad = 0
    if lanes is None:
        lanes = 512
        pad = (-total) % lanes
        flat = jnp.pad(flat, (0, pad))   # TODO(synk): could mask tail store in-kernel instead
    rows = (total + pad) // lanes
    x2 = flat.reshape(rows, lanes)

    # Sublane alignment for the row tile depends on dtype packing
    # (8 for 4-byte, 16 for bf16, 32 for 1-byte types).
    sub = max(8, 32 // max(1, jnp.dtype(dtype).itemsize))

    if rows <= sub:
        tm = rows                         # block == full array along rows
    else:
        # >= 2 grid steps when possible (v7x megacore), capped at 2048 rows.
        tm = min(max_rows_per_block, _round_up(pl.cdiv(rows, 2), sub))
        tm = min(tm, _round_up(rows, sub))
    grid = (pl.cdiv(rows, tm),)           # ragged last block is masked by Pallas

    out2 = pl.pallas_call(
        phabs_kernel,
        out_shape=jax.ShapeDtypeStruct(x2.shape, dtype),
        grid=grid,
        in_specs=[
            pl.BlockSpec(memory_space=pltpu.SMEM),          # derived scalars (3,)
            pl.BlockSpec((tm, lanes), lambda i: (i, 0)),    # x tile (lane-dense)
        ],
        out_specs=pl.BlockSpec((tm, lanes), lambda i: (i, 0)),
        compiler_params=pltpu.CompilerParams(
            dimension_semantics=("parallel",),              # megacore split on v7x
            vmem_limit_bytes=32 * 1024 * 1024,              # safe on v5e/v6e/v7x
        ),
        cost_estimate=pl.CostEstimate(
            flops=4 * rows * lanes,
            transcendentals=rows * lanes,
            bytes_accessed=2 * rows * lanes * jnp.dtype(dtype).itemsize,
        ),
    )(params, x2)

    out = out2.reshape(-1)
    if pad:
        out = out[:total]
    return out.reshape(orig_shape)


def init_phabs_weights():
    # Deterministic analogue of np.random.normal([1, 7.6, 0.5], [0.2, 0.5, 0.1])
    rng = np.random.default_rng(0)
    w = rng.normal(loc=[1.0, 7.6, 0.5], scale=[0.2, 0.5, 0.1])
    return jnp.asarray(w, dtype=jnp.float32)


def _reference(x, w):
    # Pure-JAX reference matching the PyTorch expression.
    return w[0] / (1.0 + jnp.exp((w[1] - x) / w[2]))


if __name__ == "__main__":
    weights = init_phabs_weights()
    key = jax.random.PRNGKey(0)

    # Main small NCHW input of pH-like values: batch=2, channels=4, spatial 16x16.
    k0, k1, k2 = jax.random.split(key, 3)
    x_main = jax.random.uniform(k0, (2, 4, 16, 16), dtype=jnp.float32,
                                minval=4.0, maxval=10.0)

    # Extra coverage: multi-block grid and a lane-unfriendly (padded) shape.
    x_multi = jax.random.uniform(k1, (2, 4, 64, 64), dtype=jnp.float32,
                                 minval=4.0, maxval=10.0)
    x_odd = jax.random.uniform(k2, (3, 5, 7, 11), dtype=jnp.float32,
                               minval=4.0, maxval=10.0)

    for x in (x_main, x_multi, x_odd):
        y = jax.block_until_ready(phabs_forward(x, weights))
        y_ref = _reference(x, weights)
        np.testing.assert_allclose(np.asarray(y), np.asarray(y_ref),
                                   rtol=1e-5, atol=1e-5)
        assert y.shape == x.shape and y.dtype == x.dtype

    print("KERNEL_OK")
</pallas_src>

<mosaic_0001>
module attributes {stable_mosaic.version = 11 : i64} {
  func.func @phabs_kernel(%arg0: i32, %arg1: memref<3xf32, #tpu.memory_space<smem>>, %arg2: memref<4x512xf32, #tpu.memory_space<vmem>>, %arg3: memref<4x512xf32, #tpu.memory_space<vmem>>) attributes {dimension_semantics = [#tpu.dimension_semantics<parallel>], iteration_bounds = array<i64: 1>, scalar_prefetch = 0 : i64, scratch_operands = 0 : i64, tpu.core_type = #tpu.core_type<tc>, window_params = [{transform_indices = @transform_0, window_bounds = array<i64: 3>}, {transform_indices = @transform_1, window_bounds = array<i64: 4, 512>}, {transform_indices = @transform_2, window_bounds = array<i64: 4, 512>}]} {
    %c0 = arith.constant 0 : index
    %0 = memref.load %arg1[%c0] : memref<3xf32, #tpu.memory_space<smem>>
    %c1 = arith.constant 1 : index
    %1 = memref.load %arg1[%c1] : memref<3xf32, #tpu.memory_space<smem>>
    %c2 = arith.constant 2 : index
    %2 = memref.load %arg1[%c2] : memref<3xf32, #tpu.memory_space<smem>>
    %c0_0 = arith.constant 0 : index
    %c0_1 = arith.constant 0 : index
    %3 = vector.load %arg2[%c0_0, %c0_1] : memref<4x512xf32, #tpu.memory_space<vmem>>, vector<4x512xf32>
    %4 = vector.broadcast %2 : f32 to vector<4x512xf32>
    %5 = arith.mulf %3, %4 : vector<4x512xf32>
    %6 = vector.broadcast %1 : f32 to vector<4x512xf32>
    %7 = arith.subf %5, %6 : vector<4x512xf32>
    %8 = math.tanh %7 : vector<4x512xf32>
    %9 = vector.broadcast %0 : f32 to vector<4x512xf32>
    %10 = arith.mulf %9, %8 : vector<4x512xf32>
    %11 = vector.broadcast %0 : f32 to vector<4x512xf32>
    %12 = arith.addf %11, %10 : vector<4x512xf32>
    %c0_2 = arith.constant 0 : index
    %c0_3 = arith.constant 0 : index
    %13 = vector.load %arg3[%c0_2, %c0_3] : memref<4x512xf32, #tpu.memory_space<vmem>>, vector<4x512xf32>
    tpu.vector_store %arg3[%c0_2, %c0_3], %12 {strides = array<i32>} : memref<4x512xf32, #tpu.memory_space<vmem>>, vector<4x512xf32>,
    return
  }
  func.func @transform_0(%arg0: i32) -> i32 {
    %c0_i32 = arith.constant 0 : i32
    %c0_i32_0 = arith.constant 0 : i32
    return %c0_i32 : i32
  }
  func.func @transform_1(%arg0: i32) -> (i32, i32) {
    %c0_i32 = arith.constant 0 : i32
    %c0_i32_0 = arith.constant 0 : i32
    return %arg0, %c0_i32 : i32, i32
  }
  func.func @transform_2(%arg0: i32) -> (i32, i32) {
    %c0_i32 = arith.constant 0 : i32
    %c0_i32_0 = arith.constant 0 : i32
    return %arg0, %c0_i32 : i32, i32
  }
}

</mosaic_0001>

<llo_original>
// kernel: tpu_custom_call.1
$region0: #{tpu_custom_call.1}
  #allocation0 [shape = 'u32[]', space=smem, size = 0x4, offset = 0x4, fixed_abs, tag = 'smem constant byte address 0x4 - core index']
  #allocation1 [shape = 'u32[144,128]{1,0:T(1,128)}', space=vmem, size = 0x12000, scoped, tag = 'internal scratch']
  %s0 = inlined_call_operand.hbm [shape: f32[3], index: 0, kind: input, shape index: {}]
  %s1 = inlined_call_operand.hbm [shape: f32[4,512], index: 1, kind: input, shape index: {}]
  %s2 = inlined_call_operand.hbm [shape: f32[4,512], index: 2, kind: output, shape index: {}]
  %s3 = sld [smem:[#allocation0]]
  $region26: #{tpu_custom_call.1} parent=0
    _
  %s5 = ssub.s32 1, %s3
  %s6 = scalar_select 0, %s5, %s3
  $region1: #{tpu_custom_call.1} parent=0
    #allocation2 [shape = 'u8[512]{0}', space=smem, size = 0x200, scoped, tag = 'input window, operand 0, single buffered']
    #allocation3 [shape = 's32[1]{0}', space=sflag, size = 0x4, scoped, tag = 'scoped memory for tpu_custom_call.1']
    #allocation4 [shape = 's32[1]{0}', space=sflag, size = 0x4, scoped, tag = 'scoped memory for tpu_custom_call.1']
    #allocation5 [shape = 's32[1]{0}', space=sflag, size = 0x4, scoped, tag = 'scoped memory for tpu_custom_call.1']
    #allocation6 [shape = 'u8[8192]{0}', space=vmem, size = 0x2000, scoped, tag = 'input window, operand 1, single buffered']
    #allocation7 [shape = 'u8[8192]{0}', space=vmem, size = 0x2000, scoped, tag = 'output window, operand 0, single buffered']
    %7 = vsyncpa [#allocation5], 0
    %8 = vsyncpa [#allocation3], 0
    %9 = vsyncpa [#allocation4], 0
    // Predicated region
    $region2: #{tpu_custom_call.1} parent=1 // pred_check
      _
    $region3: #{tpu_custom_call.1} parent=1 // pred_check_branch
      %11 = sbr.rel (0) target = $region5
    $region4: #{tpu_custom_call.1} parent=1 // pred_region
      %s13 = ssub.s32 16, 16
      %14 = vsyncadd [#allocation5], %s13
      %17 = dma.hbm_to_smem %s0, 16, [#allocation2], [#allocation5]
    $region5: #{tpu_custom_call.1} parent=1 // pred_fallthru
      _
    // Predicated region
    $region6: #{tpu_custom_call.1} parent=1 // pred_check
      _
    $region7: #{tpu_custom_call.1} parent=1 // pred_check_branch
      %19 = sbr.rel (0) target = $region9
    $region8: #{tpu_custom_call.1} parent=1 // pred_region
      %s21 = ssub.s32 256, 256
      %22 = vsyncadd [#allocation3], %s21
      %s24 = sshll.u32 [#allocation6], 4
      %s25 = int_to_ptr.vmem [resolvable:$true] %s24
      %27 = dma.hbm_to_vmem [thread:$0]  %s1, 256, %s25, [#allocation3]
    $region9: #{tpu_custom_call.1} parent=1 // pred_fallthru
      _
    // Predicated region
    $region10: #{tpu_custom_call.1} parent=1 // pred_check
      _
    $region11: #{tpu_custom_call.1} parent=1 // pred_check_branch
      %29 = sbr.rel (0) target = $region13
    $region12: #{tpu_custom_call.1} parent=1 // pred_region
      %30 = dma.done [#allocation5], 16
    $region13: #{tpu_custom_call.1} parent=1 // pred_fallthru
      _
    // Predicated region
    $region14: #{tpu_custom_call.1} parent=1 // pred_check
      _
    $region15: #{tpu_custom_call.1} parent=1 // pred_check_branch
      %32 = sbr.rel (0) target = $region17
    $region16: #{tpu_custom_call.1} parent=1 // pred_region
      %33 = dma.done [#allocation3], 256
    $region17: #{tpu_custom_call.1} parent=1 // pred_fallthru
      _
    %34 = sfence
    %s35 = sld [smem:[#allocation2]]
    %s36 = sld [smem:[#allocation2 + $0x1]]
    %s37 = sld [smem:[#allocation2 + $0x2]]
    %v38 = vld [vmem:[#allocation6] sm:$0xff]
    %v39 = vld [vmem:[#allocation6 + $0x8] sm:$0xff]
    %v40 = vstv %s37
    %v41 = vmul.f32 %v38, %v40
    %v42 = vmul.f32 %v39, %v40
    %v43 = vstv %s36
    %v44 = vsub.f32 %v41, %v43
    %v45 = vsub.f32 %v42, %v43
    %v46 = vtanh.pop %v44
    %v47 = vtanh.pop %v45
    %v48 = vstv %s35
    %v49 = vmul.f32 %v48, %v46
    %v50 = vmul.f32 %v48, %v47
    %v51 = vadd.f32 %v48, %v49
    %v52 = vadd.f32 %v48, %v50
    %53 = vst [vmem:[#allocation7] sm:$0xff] %v51
    %54 = vst [vmem:[#allocation7 + $0x8] sm:$0xff] %v52
    // Predicated region
    $region18: #{tpu_custom_call.1} parent=1 // pred_check
      _
    $region19: #{tpu_custom_call.1} parent=1 // pred_check_branch
      %56 = sbr.rel (0) target = $region21
    $region20: #{tpu_custom_call.1} parent=1 // pred_region
      %s58 = ssub.s32 256, 256
      %59 = vsyncadd [#allocation4], %s58
      %s61 = sshll.u32 [#allocation7], 4
      %s62 = int_to_ptr.vmem [resolvable:$true] %s61
      %64 = dma.vmem_to_hbm [thread:$0]  %s62, 256, %s2, [#allocation4]
    $region21: #{tpu_custom_call.1} parent=1 // pred_fallthru
      _
    // Predicated region
    $region22: #{tpu_custom_call.1} parent=1 // pred_check
      _
    $region23: #{tpu_custom_call.1} parent=1 // pred_check_branch
      %66 = sbr.rel (0) target = $region25
    $region24: #{tpu_custom_call.1} parent=1 // pred_region
      %67 = dma.done [#allocation4], 256
    $region25: #{tpu_custom_call.1} parent=1 // pred_fallthru
      _
    %68 = vsyncpa [#allocation3], 1
    %69 = vsyncpa [#allocation4], 1
    %70 = vsyncpa [#allocation5], 1

</llo_original>
